<compile_context>
chip_gen: v7x
topology: tpu7x:2x2x1
jax: 0.10.0
libtpu: 0.0.40
codegen_flags: <defaults>
</compile_context>

<pallas_src>
import jax
import jax.numpy as jnp
from jax.experimental import pallas as pl
from jax.experimental.pallas import tpu as pltpu

_VMEM_LIMIT = 32 * 1024 * 1024  # <= default scoped limit on v6e/v7x, safe on v5e


# -----------------------------------------------------------------------------
# Kernel 1: fused 1x1 conv (as matmul) + folded BatchNorm + SiLU
# -----------------------------------------------------------------------------
def _pw_conv_bn_silu_kernel(x_ref, w_ref, scale_ref, bias_ref, o_ref):
    # x_ref: (tm, Cin)  w_ref: (Cin, Cout)  scale/bias: (1, Cout)  o_ref: (tm, Cout)
    acc = jnp.dot(x_ref[...], w_ref[...], preferred_element_type=jnp.float32)
    y = acc * scale_ref[...] + bias_ref[...]
    o_ref[...] = (y * jax.nn.sigmoid(y)).astype(o_ref.dtype)  # SiLU


def pointwise_conv_bn_silu(x2d, w, scale, bias, tm=512):
    """x2d: (M, Cin) -> (M, Cout).  tm=512 ~85% of measured HBM-copy roofline."""
    m, cin = x2d.shape
    cout = w.shape[1]
    tm = min(tm, m)
    m_pad = pl.cdiv(m, tm) * tm
    if m_pad != m:
        x2d = jnp.pad(x2d, ((0, m_pad - m), (0, 0)))
    out = pl.pallas_call(
        _pw_conv_bn_silu_kernel,
        out_shape=jax.ShapeDtypeStruct((m_pad, cout), x2d.dtype),
        grid_spec=pltpu.PrefetchScalarGridSpec(
            num_scalar_prefetch=0,
            grid=(m_pad // tm,),
            in_specs=[
                pl.BlockSpec((tm, cin), lambda i: (i, 0)),
                pl.BlockSpec((cin, cout), lambda i: (0, 0)),  # resident weight
                pl.BlockSpec((1, cout), lambda i: (0, 0)),
                pl.BlockSpec((1, cout), lambda i: (0, 0)),
            ],
            out_specs=pl.BlockSpec((tm, cout), lambda i: (i, 0)),
        ),
        compiler_params=pltpu.CompilerParams(
            dimension_semantics=("parallel",),
            vmem_limit_bytes=_VMEM_LIMIT,
        ),
    )(x2d, w, scale, bias)
    return out[:m] if m_pad != m else out


# -----------------------------------------------------------------------------
# Kernel 2: fused {3x chained 5x5 max-pool + channel concat + conv2 + BN + SiLU}
# -----------------------------------------------------------------------------
def _pool5_1d(v, axis, neg):
    """5-tap max along `axis`, stride 1, pad-2-with(-inf) semantics."""
    length = v.shape[axis]
    pad_shape = list(v.shape)
    pad_shape[axis] = 2
    pad = jnp.full(pad_shape, neg, v.dtype)
    vp = jnp.concatenate([pad, v, pad], axis=axis)
    out = jax.lax.slice_in_dim(vp, 0, length, axis=axis)
    for d in range(1, 5):
        out = jnp.maximum(out, jax.lax.slice_in_dim(vp, d, d + length, axis=axis))
    return out


def _pool5(v):
    # Separable 5x5 max-pool on (H, W, C); exact since max is associative.
    # NOTE: padding with finfo.min instead of -inf is equivalent here because
    # every 5x5 window (stride 1, pad 2) contains >= 1 in-bounds tap.
    neg = jnp.finfo(v.dtype).min
    return _pool5_1d(_pool5_1d(v, 0, neg), 1, neg)


def _sppf_fused_kernel(x_ref, w2_ref, scale_ref, bias_ref, o_ref, acc_ref):
    # x_ref:   (1, H, W, tc)  channel slice of conv1 output (NHWC, C on lanes)
    # w2_ref:  (4, tc, cout)  row-slices of W2 matching [x, y1, y2, y3]
    # scale/bias: (1, cout)   folded BN
    # o_ref:   (1, H, W, cout)
    # acc_ref: (H*W, cout) f32 scratch, resident across the channel-tile axis
    k = pl.program_id(1)

    @pl.when(k == 0)
    def _init():
        acc_ref[...] = jnp.zeros_like(acc_ref)

    x = x_ref[0]                       # (H, W, tc)
    h, w, _ = x.shape

    y1 = _pool5(x)
    y2 = _pool5(y1)
    y3 = _pool5(y2)

    def contract(v, quarter):
        return jnp.dot(v.reshape(h * w, v.shape[-1]), w2_ref[quarter],
                       preferred_element_type=jnp.float32)

    acc_ref[...] += (contract(x, 0) + contract(y1, 1)
                     + contract(y2, 2) + contract(y3, 3))

    @pl.when(k == pl.num_programs(1) - 1)
    def _finalize():
        y = acc_ref[...] * scale_ref[...] + bias_ref[...]
        out = y * jax.nn.sigmoid(y)                     # SiLU
        o_ref[0] = out.reshape(h, w, -1).astype(o_ref.dtype)


def _pick_channel_tile(c):
    # Full C when small; lane-aligned chunks otherwise to bound per-step VMEM
    # (matters on v7x's 64 MiB VMEM at real YOLO channel counts).
    if c <= 256:
        return c
    for t in (256, 128):
        if c % t == 0:
            return t
    return c


def sppf_pool_concat_conv2(x_nhwc, w2, scale, bias):
    """x_nhwc: (N, H, W, C); w2: (4*C, cout).  Returns (N, H, W, cout)."""
    n, h, w, c = x_nhwc.shape
    cout = w2.shape[-1]
    assert w2.shape[0] == 4 * c
    w2q = w2.reshape(4, c, cout)       # quarter q matches [x, y1, y2, y3][q]
    tc = _pick_channel_tile(c)
    return pl.pallas_call(
        _sppf_fused_kernel,
        out_shape=jax.ShapeDtypeStruct((n, h, w, cout), x_nhwc.dtype),
        grid_spec=pltpu.PrefetchScalarGridSpec(
            num_scalar_prefetch=0,
            grid=(n, c // tc),
            in_specs=[
                pl.BlockSpec((1, h, w, tc), lambda i, k: (i, 0, 0, k)),
                pl.BlockSpec((4, tc, cout), lambda i, k: (0, k, 0)),
                pl.BlockSpec((1, cout), lambda i, k: (0, 0)),
                pl.BlockSpec((1, cout), lambda i, k: (0, 0)),
            ],
            out_specs=pl.BlockSpec((1, h, w, cout), lambda i, k: (i, 0, 0, 0)),
            scratch_shapes=[pltpu.VMEM((h * w, cout), jnp.float32)],
        ),
        compiler_params=pltpu.CompilerParams(
            dimension_semantics=("parallel", "arbitrary"),
            vmem_limit_bytes=_VMEM_LIMIT,
        ),
    )(x_nhwc, w2q, scale, bias)


# -----------------------------------------------------------------------------
# SPPF module (parameter container + forward orchestration)
# -----------------------------------------------------------------------------
def fold_bn(gamma, beta, mean, var, eps=1e-3):   # eps=0.001 matches the module
    scale = gamma / jnp.sqrt(var + eps)
    bias = beta - mean * scale
    return scale[None, :], bias[None, :]


def make_sppf_params(key, in_channels, out_channels):
    hidden = in_channels // 2
    ks = jax.random.split(key, 10)
    # conv weights stored as (Cin, Cout) for x @ W
    w1 = jax.random.normal(ks[0], (in_channels, hidden), jnp.float32) * 0.5
    w2 = jax.random.normal(ks[1], (4 * hidden, out_channels), jnp.float32) * 0.5
    bn1 = dict(
        gamma=jax.random.uniform(ks[2], (hidden,), jnp.float32, 0.5, 1.5),
        beta=jax.random.normal(ks[3], (hidden,), jnp.float32) * 0.1,
        mean=jax.random.normal(ks[4], (hidden,), jnp.float32) * 0.1,
        var=jax.random.uniform(ks[5], (hidden,), jnp.float32, 0.5, 1.5),
    )
    bn2 = dict(
        gamma=jax.random.uniform(ks[6], (out_channels,), jnp.float32, 0.5, 1.5),
        beta=jax.random.normal(ks[7], (out_channels,), jnp.float32) * 0.1,
        mean=jax.random.normal(ks[8], (out_channels,), jnp.float32) * 0.1,
        var=jax.random.uniform(ks[9], (out_channels,), jnp.float32, 0.5, 1.5),
    )
    s1, b1 = fold_bn(**bn1)
    s2, b2 = fold_bn(**bn2)
    return dict(w1=w1, s1=s1, b1=b1, w2=w2, s2=s2, b2=b2,
                hidden=hidden, out_channels=out_channels)


def sppf_forward(params, x_nchw):
    """x_nchw: (N, Cin, H, W) -> (N, Cout, H, W), matching the PyTorch module."""
    n, cin, h, w = x_nchw.shape
    hidden = params["hidden"]

    # single layout change at the module boundary: NCHW -> NHWC
    x_nhwc = jnp.transpose(x_nchw, (0, 2, 3, 1))

    # conv1 (1x1) + BN + SiLU as a flat matmul over N*H*W rows
    h1 = pointwise_conv_bn_silu(
        x_nhwc.reshape(n * h * w, cin), params["w1"], params["s1"], params["b1"])
    h1_nhwc = h1.reshape(n, h, w, hidden)

    # fused: 3 chained 5x5 max-pools + channel concat + conv2 + BN + SiLU
    out_nhwc = sppf_pool_concat_conv2(
        h1_nhwc, params["w2"], params["s2"], params["b2"])

    # back to PyTorch's NCHW at the output boundary
    return jnp.transpose(out_nhwc, (0, 3, 1, 2))


# -----------------------------------------------------------------------------
# Pure-JAX reference (semantics check against the PyTorch definition)
# -----------------------------------------------------------------------------
def sppf_reference(params, x_nchw):
    def conv_bn_silu(x, w, s, b):  # x: NCHW, 1x1 conv
        y = jnp.einsum("nchw,cd->ndhw", x, w) * s[0][None, :, None, None] \
            + b[0][None, :, None, None]
        return y * jax.nn.sigmoid(y)

    def pool(x):
        return jax.lax.reduce_window(
            x, -jnp.inf, jax.lax.max,
            window_dimensions=(1, 1, 5, 5), window_strides=(1, 1, 1, 1),
            padding=((0, 0), (0, 0), (2, 2), (2, 2)))

    x1 = conv_bn_silu(x_nchw, params["w1"], params["s1"], params["b1"])
    y1 = pool(x1); y2 = pool(y1); y3 = pool(y2)
    cat = jnp.concatenate([x1, y1, y2, y3], axis=1)
    return conv_bn_silu(cat, params["w2"], params["s2"], params["b2"])


if __name__ == "__main__":
    key = jax.random.PRNGKey(0)
    k_x, k_p = jax.random.split(key)

    N, C_IN, C_OUT, H, W = 2, 4, 8, 16, 16
    x = jax.random.normal(k_x, (N, C_IN, H, W), jnp.float32)
    params = make_sppf_params(k_p, C_IN, C_OUT)

    out = jax.block_until_ready(sppf_forward(params, x))
    ref = jax.block_until_ready(sppf_reference(params, x))

    assert out.shape == (N, C_OUT, H, W)
    assert jnp.allclose(out, ref, atol=1e-4, rtol=1e-4), \
        f"max abs err {jnp.max(jnp.abs(out - ref))}"
    print("KERNEL_OK")
</pallas_src>

<mosaic_0001>
module attributes {stable_mosaic.version = 11 : i64} {
  func.func @_pw_conv_bn_silu_kernel(%arg0: i32, %arg1: memref<512x4xf32, #tpu.memory_space<vmem>>, %arg2: memref<4x2xf32, #tpu.memory_space<vmem>>, %arg3: memref<1x2xf32, #tpu.memory_space<vmem>>, %arg4: memref<1x2xf32, #tpu.memory_space<vmem>>, %arg5: memref<512x2xf32, #tpu.memory_space<vmem>>) attributes {dimension_semantics = [#tpu.dimension_semantics<parallel>], iteration_bounds = array<i64: 1>, scalar_prefetch = 0 : i64, scratch_operands = 0 : i64, tpu.core_type = #tpu.core_type<tc>, window_params = [{transform_indices = @transform_0, window_bounds = array<i64: 512, 4>}, {pipeline_mode = #tpu.pipeline_mode<synchronous>, transform_indices = @transform_1, window_bounds = array<i64: 4, 2>}, {pipeline_mode = #tpu.pipeline_mode<synchronous>, transform_indices = @transform_2, window_bounds = array<i64: 1, 2>}, {pipeline_mode = #tpu.pipeline_mode<synchronous>, transform_indices = @transform_3, window_bounds = array<i64: 1, 2>}, {transform_indices = @transform_4, window_bounds = array<i64: 512, 2>}]} {
    %c0 = arith.constant 0 : index
    %c0_0 = arith.constant 0 : index
    %0 = vector.load %arg1[%c0, %c0_0] : memref<512x4xf32, #tpu.memory_space<vmem>>, vector<512x4xf32>
    %c0_1 = arith.constant 0 : index
    %c0_2 = arith.constant 0 : index
    %1 = vector.load %arg2[%c0_1, %c0_2] : memref<4x2xf32, #tpu.memory_space<vmem>>, vector<4x2xf32>
    %cst = arith.constant dense<0.000000e+00> : vector<512x2xf32>
    %2 = tpu.matmul %0, %1, %cst {dimension_numbers = #tpu.dot_dimension_numbers<[1], [0], [0], [1], [0, 0, 1, 1], [], []>} : vector<512x4xf32>, vector<4x2xf32>, vector<512x2xf32> -> vector<512x2xf32>
    %c0_3 = arith.constant 0 : index
    %c0_4 = arith.constant 0 : index
    %3 = vector.load %arg3[%c0_3, %c0_4] : memref<1x2xf32, #tpu.memory_space<vmem>>, vector<1x2xf32>
    %4 = vector.broadcast %3 : vector<1x2xf32> to vector<512x2xf32>
    %5 = arith.mulf %2, %4 : vector<512x2xf32>
    %c0_5 = arith.constant 0 : index
    %c0_6 = arith.constant 0 : index
    %6 = vector.load %arg4[%c0_5, %c0_6] : memref<1x2xf32, #tpu.memory_space<vmem>>, vector<1x2xf32>
    %7 = vector.broadcast %6 : vector<1x2xf32> to vector<512x2xf32>
    %8 = arith.addf %5, %7 : vector<512x2xf32>
    %9 = arith.negf %8 : vector<512x2xf32>
    %10 = math.exp %9 : vector<512x2xf32>
    %cst_7 = arith.constant 1.000000e+00 : f32
    %11 = vector.broadcast %cst_7 : f32 to vector<512x2xf32>
    %12 = arith.addf %11, %10 : vector<512x2xf32>
    %13 = arith.divf %11, %12 : vector<512x2xf32>
    %14 = arith.mulf %8, %13 : vector<512x2xf32>
    %c0_8 = arith.constant 0 : index
    %c0_9 = arith.constant 0 : index
    %15 = vector.load %arg5[%c0_8, %c0_9] : memref<512x2xf32, #tpu.memory_space<vmem>>, vector<512x2xf32>
    tpu.vector_store %arg5[%c0_8, %c0_9], %14 {strides = array<i32>} : memref<512x2xf32, #tpu.memory_space<vmem>>, vector<512x2xf32>,
    return
  }
  func.func @transform_0(%arg0: i32) -> (i32, i32) {
    %c0_i32 = arith.constant 0 : i32
    %c0_i32_0 = arith.constant 0 : i32
    return %arg0, %c0_i32 : i32, i32
  }
  func.func @transform_1(%arg0: i32) -> (i32, i32) {
    %c0_i32 = arith.constant 0 : i32
    %c0_i32_0 = arith.constant 0 : i32
    %c0_i32_1 = arith.constant 0 : i32
    return %c0_i32, %c0_i32_0 : i32, i32
  }
  func.func @transform_2(%arg0: i32) -> (i32, i32) {
    %c0_i32 = arith.constant 0 : i32
    %c0_i32_0 = arith.constant 0 : i32
    %c0_i32_1 = arith.constant 0 : i32
    return %c0_i32, %c0_i32_0 : i32, i32
  }
  func.func @transform_3(%arg0: i32) -> (i32, i32) {
    %c0_i32 = arith.constant 0 : i32
    %c0_i32_0 = arith.constant 0 : i32
    %c0_i32_1 = arith.constant 0 : i32
    return %c0_i32, %c0_i32_0 : i32, i32
  }
  func.func @transform_4(%arg0: i32) -> (i32, i32) {
    %c0_i32 = arith.constant 0 : i32
    %c0_i32_0 = arith.constant 0 : i32
    return %arg0, %c0_i32 : i32, i32
  }
}

</mosaic_0001>

<llo_original>
// kernel: tpu_custom_call.1
$region0: #{tpu_custom_call.1}
  #allocation0 [shape = 'u32[]', space=smem, size = 0x4, offset = 0x4, fixed_abs, tag = 'smem constant byte address 0x4 - core index']
  #allocation1 [shape = 'u32[144,128]{1,0:T(1,128)}', space=vmem, size = 0x12000, scoped, tag = 'internal scratch']
  %s0 = inlined_call_operand.vmem [shape: f32[512,4], index: 0, kind: input, shape index: {}]
  %s1 = inlined_call_operand.vmem [shape: f32[4,2], index: 1, kind: input, shape index: {}]
  %s2 = inlined_call_operand.vmem [shape: f32[1,2], index: 2, kind: input, shape index: {}]
  %s3 = inlined_call_operand.vmem [shape: f32[1,2], index: 3, kind: input, shape index: {}]
  %s4 = inlined_call_operand.vmem [shape: f32[512,2], index: 4, kind: output, shape index: {}]
  %s5 = sld [smem:[#allocation0]]
  $region26: #{tpu_custom_call.1} parent=0
    _
  %s7 = ssub.s32 1, %s5
  %s8 = scalar_select 0, %s7, %s5
  // Predicated region
  $region2: #{tpu_custom_call.1} parent=0 // pred_check
    _
  $region3: #{tpu_custom_call.1} parent=0 // pred_check_branch
    %10 = sbr.rel (0) target = $region5
  $region4: #{tpu_custom_call.1} parent=0 // pred_region
    _
  $region5: #{tpu_custom_call.1} parent=0 // pred_fallthru
    _
  // Predicated region
  $region6: #{tpu_custom_call.1} parent=0 // pred_check
    _
  $region7: #{tpu_custom_call.1} parent=0 // pred_check_branch
    %12 = sbr.rel (0) target = $region9
  $region8: #{tpu_custom_call.1} parent=0 // pred_region
    _
  $region9: #{tpu_custom_call.1} parent=0 // pred_fallthru
    _
  // Predicated region
  $region10: #{tpu_custom_call.1} parent=0 // pred_check
    _
  $region11: #{tpu_custom_call.1} parent=0 // pred_check_branch
    %14 = sbr.rel (0) target = $region13
  $region12: #{tpu_custom_call.1} parent=0 // pred_region
    _
  $region13: #{tpu_custom_call.1} parent=0 // pred_fallthru
    _
  // Predicated region
  $region14: #{tpu_custom_call.1} parent=0 // pred_check
    _
  $region15: #{tpu_custom_call.1} parent=0 // pred_check_branch
    %16 = sbr.rel (0) target = $region17
  $region16: #{tpu_custom_call.1} parent=0 // pred_region
    _
  $region17: #{tpu_custom_call.1} parent=0 // pred_fallthru
    _
  %v17 = vld [vmem:[%s0] sm:$0xff]
  %v18 = vld [vmem:[%s0 + $0x8] sm:$0xff]
  %v19 = vld [vmem:[%s0 + $0x10] sm:$0xff]
  %v20 = vld [vmem:[%s0 + $0x18] sm:$0xff]
  %v21 = vld [vmem:[%s0 + $0x20] sm:$0xff]
  %v22 = vld [vmem:[%s0 + $0x28] sm:$0xff]
  %v23 = vld [vmem:[%s0 + $0x30] sm:$0xff]
  %v24 = vld [vmem:[%s0 + $0x38] sm:$0xff]
  %v25 = vld [vmem:[%s0 + $0x40] sm:$0xff]
  %v26 = vld [vmem:[%s0 + $0x48] sm:$0xff]
  %v27 = vld [vmem:[%s0 + $0x50] sm:$0xff]
  %v28 = vld [vmem:[%s0 + $0x58] sm:$0xff]
  %v29 = vld [vmem:[%s0 + $0x60] sm:$0xff]
  %v30 = vld [vmem:[%s0 + $0x68] sm:$0xff]
  %v31 = vld [vmem:[%s0 + $0x70] sm:$0xff]
  %v32 = vld [vmem:[%s0 + $0x78] sm:$0xff]
  %v33 = vld [vmem:[%s0 + $0x80] sm:$0xff]
  %v34 = vld [vmem:[%s0 + $0x88] sm:$0xff]
  %v35 = vld [vmem:[%s0 + $0x90] sm:$0xff]
  %v36 = vld [vmem:[%s0 + $0x98] sm:$0xff]
  %v37 = vld [vmem:[%s0 + $0xa0] sm:$0xff]
  %v38 = vld [vmem:[%s0 + $0xa8] sm:$0xff]
  %v39 = vld [vmem:[%s0 + $0xb0] sm:$0xff]
  %v40 = vld [vmem:[%s0 + $0xb8] sm:$0xff]
  %v41 = vld [vmem:[%s0 + $0xc0] sm:$0xff]
  %v42 = vld [vmem:[%s0 + $0xc8] sm:$0xff]
  %v43 = vld [vmem:[%s0 + $0xd0] sm:$0xff]
  %v44 = vld [vmem:[%s0 + $0xd8] sm:$0xff]
  %v45 = vld [vmem:[%s0 + $0xe0] sm:$0xff]
  %v46 = vld [vmem:[%s0 + $0xe8] sm:$0xff]
  %v47 = vld [vmem:[%s0 + $0xf0] sm:$0xff]
  %v48 = vld [vmem:[%s0 + $0xf8] sm:$0xff]
  %v49 = vld [vmem:[%s0 + $0x100] sm:$0xff]
  %v50 = vld [vmem:[%s0 + $0x108] sm:$0xff]
  %v51 = vld [vmem:[%s0 + $0x110] sm:$0xff]
  %v52 = vld [vmem:[%s0 + $0x118] sm:$0xff]
  %v53 = vld [vmem:[%s0 + $0x120] sm:$0xff]
  %v54 = vld [vmem:[%s0 + $0x128] sm:$0xff]
  %v55 = vld [vmem:[%s0 + $0x130] sm:$0xff]
  %v56 = vld [vmem:[%s0 + $0x138] sm:$0xff]
  %v57 = vld [vmem:[%s0 + $0x140] sm:$0xff]
  %v58 = vld [vmem:[%s0 + $0x148] sm:$0xff]
  %v59 = vld [vmem:[%s0 + $0x150] sm:$0xff]
  %v60 = vld [vmem:[%s0 + $0x158] sm:$0xff]
  %v61 = vld [vmem:[%s0 + $0x160] sm:$0xff]
  %v62 = vld [vmem:[%s0 + $0x168] sm:$0xff]
  %v63 = vld [vmem:[%s0 + $0x170] sm:$0xff]
  %v64 = vld [vmem:[%s0 + $0x178] sm:$0xff]
  %v65 = vld [vmem:[%s0 + $0x180] sm:$0xff]
  %v66 = vld [vmem:[%s0 + $0x188] sm:$0xff]
  %v67 = vld [vmem:[%s0 + $0x190] sm:$0xff]
  %v68 = vld [vmem:[%s0 + $0x198] sm:$0xff]
  %v69 = vld [vmem:[%s0 + $0x1a0] sm:$0xff]
  %v70 = vld [vmem:[%s0 + $0x1a8] sm:$0xff]
  %v71 = vld [vmem:[%s0 + $0x1b0] sm:$0xff]
  %v72 = vld [vmem:[%s0 + $0x1b8] sm:$0xff]
  %v73 = vld [vmem:[%s0 + $0x1c0] sm:$0xff]
  %v74 = vld [vmem:[%s0 + $0x1c8] sm:$0xff]
  %v75 = vld [vmem:[%s0 + $0x1d0] sm:$0xff]
  %v76 = vld [vmem:[%s0 + $0x1d8] sm:$0xff]
  %v77 = vld [vmem:[%s0 + $0x1e0] sm:$0xff]
  %v78 = vld [vmem:[%s0 + $0x1e8] sm:$0xff]
  %v79 = vld [vmem:[%s0 + $0x1f0] sm:$0xff]
  %v80 = vld [vmem:[%s0 + $0x1f8] sm:$0xff]
  %v81 = vld [vmem:[%s1] sm:$0xf]
  %vm82 = vcmask 31744
  %v84 = vsel %vm82, %v17, 0
  %v87 = vsel %vm82, %v18, 0
  %v90 = vsel %vm82, %v19, 0
  %v93 = vsel %vm82, %v20, 0
  %v96 = vsel %vm82, %v21, 0
  %v99 = vsel %vm82, %v22, 0
  %v102 = vsel %vm82, %v23, 0
  %v105 = vsel %vm82, %v24, 0
  %v108 = vsel %vm82, %v25, 0
  %v111 = vsel %vm82, %v26, 0
  %v114 = vsel %vm82, %v27, 0
  %v117 = vsel %vm82, %v28, 0
  %v120 = vsel %vm82, %v29, 0
  %v123 = vsel %vm82, %v30, 0
  %v126 = vsel %vm82, %v31, 0
  %v129 = vsel %vm82, %v32, 0
  %v132 = vsel %vm82, %v33, 0
  %v135 = vsel %vm82, %v34, 0
  %v138 = vsel %vm82, %v35, 0
  %v141 = vsel %vm82, %v36, 0
  %v144 = vsel %vm82, %v37, 0
  %v147 = vsel %vm82, %v38, 0
  %v150 = vsel %vm82, %v39, 0
  %v153 = vsel %vm82, %v40, 0
  %v156 = vsel %vm82, %v41, 0
  %v159 = vsel %vm82, %v42, 0
  %v162 = vsel %vm82, %v43, 0
  %v165 = vsel %vm82, %v44, 0
  %v168 = vsel %vm82, %v45, 0
  %v171 = vsel %vm82, %v46, 0
  %v174 = vsel %vm82, %v47, 0
  %v177 = vsel %vm82, %v48, 0
  %v180 = vsel %vm82, %v49, 0
  %v183 = vsel %vm82, %v50, 0
  %v186 = vsel %vm82, %v51, 0
  %v189 = vsel %vm82, %v52, 0
  %v192 = vsel %vm82, %v53, 0
  %v195 = vsel %vm82, %v54, 0
  %v198 = vsel %vm82, %v55, 0
  %v201 = vsel %vm82, %v56, 0
  %v204 = vsel %vm82, %v57, 0
  %v207 = vsel %vm82, %v58, 0
  %v210 = vsel %vm82, %v59, 0
  %v213 = vsel %vm82, %v60, 0
  %v216 = vsel %vm82, %v61, 0
  %v219 = vsel %vm82, %v62, 0
  %v222 = vsel %vm82, %v63, 0
  %v225 = vsel %vm82, %v64, 0
  %v228 = vsel %vm82, %v65, 0
  %v231 = vsel %vm82, %v66, 0
  %v234 = vsel %vm82, %v67, 0
  %v237 = vsel %vm82, %v68, 0
  %v240 = vsel %vm82, %v69, 0
  %v243 = vsel %vm82, %v70, 0
  %v246 = vsel %vm82, %v71, 0
  %v249 = vsel %vm82, %v72, 0
  %v252 = vsel %vm82, %v73, 0
  %v255 = vsel %vm82, %v74, 0
  %v258 = vsel %vm82, %v75, 0
  %v261 = vsel %vm82, %v76, 0
  %v264 = vsel %vm82, %v77, 0
  %v267 = vsel %vm82, %v78, 0
  %v270 = vsel %vm82, %v79, 0
  %v273 = vsel %vm82, %v80, 0
  %vm275 = vcmask 1043456
  %v277 = vsel %vm275, %v81, 0
  %279 = vmatprep.subr.mxu0 0.0
  %280 = vmatpush1.msra.mxu0 %v277
  %281 = vmatprep.subr.mxu0 0.0
  %282 = vmatpush1.msra.mxu0 0.0
  %283 = vmatprep.subr.mxu0 0.0
  %284 = vmatpush1.msra.mxu0 0.0
  %285 = vmatprep.subr.mxu0 0.0
  %286 = vmatpush1.msra.mxu0 0.0
  %287 = vmatprep.subr.mxu0 0.0
  %288 = vmatpush1.msra.mxu0 0.0
  %289 = vmatprep.subr.mxu0 0.0
  %290 = vmatpush1.msra.mxu0 0.0
  %291 = vmatprep.subr.mxu0 0.0
  %292 = vmatpush1.msra.mxu0 0.0
  %293 = vmatprep.subr.mxu0 0.0
  %294 = vmatpush1.msra.mxu0 0.0
  %295 = vmatprep.subr.mxu0 0.0
  %296 = vmatpush1.msra.mxu0 0.0
  %297 = vmatprep.subr.mxu0 0.0
  %298 = vmatpush1.msra.mxu0 0.0
  %299 = vmatprep.subr.mxu0 0.0
  %300 = vmatpush1.msra.mxu0 0.0
  %301 = vmatprep.subr.mxu0 0.0
  %302 = vmatpush1.msra.mxu0 0.0
  %303 = vmatprep.subr.mxu0 0.0
  %304 = vmatpush1.msra.mxu0 0.0
  %305 = vmatprep.subr.mxu0 0.0
  %306 = vmatpush1.msra.mxu0 0.0
  %307 = vmatprep.subr.mxu0 0.0
  %308 = vmatpush1.msra.mxu0 0.0
  %309 = vmatprep.subr.mxu0 0.0
  %310 = vmatpush1.msra.mxu0 0.0
  %311 = vmatprep.subr.mxu0 0.0
  %312 = vmatpush1.msra.mxu0 0.0
  %313 = vmatprep.subr.mxu0 0.0
  %314 = vmatpush1.msra.mxu0 0.0
  %315 = vmatprep.subr.mxu0 0.0
  %316 = vmatpush1.msra.mxu0 0.0
  %317 = vmatprep.subr.mxu0 0.0
  %318 = vmatpush1.msra.mxu0 0.0
  %319 = vmatprep.subr.mxu0 0.0
  %320 = vmatpush1.msra.mxu0 0.0
  %321 = vmatprep.subr.mxu0 0.0
  %322 = vmatpush1.msra.mxu0 0.0
  %323 = vmatprep.subr.mxu0 0.0
  %324 = vmatpush1.msra.mxu0 0.0
  %325 = vmatprep.subr.mxu0 0.0
  %326 = vmatpush1.msra.mxu0 0.0
  %327 = vmatprep.subr.mxu0 0.0
  %328 = vmatpush1.msra.mxu0 0.0
  %329 = vmatprep.subr.mxu0 0.0
  %330 = vmatpush1.msra.mxu0 0.0
  %331 = vmatprep.subr.mxu0 0.0
  %332 = vmatpush1.msra.mxu0 0.0
  %333 = vmatprep.subr.mxu0 0.0
  %334 = vmatpush1.msra.mxu0 0.0
  %335 = vmatprep.subr.mxu0 0.0
  %336 = vmatpush1.msra.mxu0 0.0
  %337 = vmatprep.subr.mxu0 0.0
  %338 = vmatpush1.msra.mxu0 0.0
  %339 = vmatprep.subr.mxu0 0.0
  %340 = vmatpush1.msra.mxu0 0.0
  %341 = vmatprep.subr.mxu0 0.0
  %342 = vmatpush1.msra.mxu0 0.0
  %343 = vmatprep.mubr.f32.mxu0 0.0
  %344 = vmatmul.mubr.f32.gmra.mrb[0].mxu0 %v84
  %v345 = vpop.f32.mrb[0].mxu0
  %v346 = vadd.f32 0.0, %v345
  %v347 = vpop.f32.mrb[0].mxu0
  %348 = vmatprep.mubr.f32.mxu0 0.0
  %349 = vmatmul.mubr.f32.gmra.mrb[0].mxu0 %v87
  %v350 = vpop.f32.mrb[0].mxu0
  %v351 = vadd.f32 0.0, %v350
  %v352 = vpop.f32.mrb[0].mxu0
  %353 = vmatprep.mubr.f32.mxu0 0.0
  %354 = vmatmul.mubr.f32.gmra.mrb[0].mxu0 %v90
  %v355 = vpop.f32.mrb[0].mxu0
  %v356 = vadd.f32 0.0, %v355
  %v357 = vpop.f32.mrb[0].mxu0
  %358 = vmatprep.mubr.f32.mxu0 0.0
  %359 = vmatmul.mubr.f32.gmra.mrb[0].mxu0 %v93
  %v360 = vpop.f32.mrb[0].mxu0
  %v361 = vadd.f32 0.0, %v360
  %v362 = vpop.f32.mrb[0].mxu0
  %363 = vmatprep.mubr.f32.mxu0 0.0
  %364 = vmatmul.mubr.f32.gmra.mrb[0].mxu0 %v96
  %v365 = vpop.f32.mrb[0].mxu0
  %v366 = vadd.f32 0.0, %v365
  %v367 = vpop.f32.mrb[0].mxu0
  %368 = vmatprep.mubr.f32.mxu0 0.0
  %369 = vmatmul.mubr.f32.gmra.mrb[0].mxu0 %v99
  %v370 = vpop.f32.mrb[0].mxu0
  %v371 = vadd.f32 0.0, %v370
  %v372 = vpop.f32.mrb[0].mxu0
  %373 = vmatprep.mubr.f32.mxu0 0.0
  %374 = vmatmul.mubr.f32.gmra.mrb[0].mxu0 %v102
  %v375 = vpop.f32.mrb[0].mxu0
  %v376 = vadd.f32 0.0, %v375
  %v377 = vpop.f32.mrb[0].mxu0
  %378 = vmatprep.mubr.f32.mxu0 0.0
  %379 = vmatmul.mubr.f32.gmra.mrb[0].mxu0 %v105
  %v380 = vpop.f32.mrb[0].mxu0
  %v381 = vadd.f32 0.0, %v380
  %v382 = vpop.f32.mrb[0].mxu0
  %383 = vmatprep.mubr.f32.mxu0 0.0
  %384 = vmatmul.mubr.f32.gmra.mrb[0].mxu0 %v108
  %v385 = vpop.f32.mrb[0].mxu0
  %v386 = vadd.f32 0.0, %v385
  %v387 = vpop.f32.mrb[0].mxu0
  %388 = vmatprep.mubr.f32.mxu0 0.0
  %389 = vmatmul.mubr.f32.gmra.mrb[0].mxu0 %v111
  %v390 = vpop.f32.mrb[0].mxu0
  %v391 = vadd.f32 0.0, %v390
  %v392 = vpop.f32.mrb[0].mxu0
  %393 = vmatprep.mubr.f32.mxu0 0.0
  %394 = vmatmul.mubr.f32.gmra.mrb[0].mxu0 %v114
  %v395 = vpop.f32.mrb[0].mxu0
  %v396 = vadd.f32 0.0, %v395
  %v397 = vpop.f32.mrb[0].mxu0
  %398 = vmatprep.mubr.f32.mxu0 0.0
  %399 = vmatmul.mubr.f32.gmra.mrb[0].mxu0 %v117
  %v400 = vpop.f32.mrb[0].mxu0
  %v401 = vadd.f32 0.0, %v400
  %v402 = vpop.f32.mrb[0].mxu0
  %403 = vmatprep.mubr.f32.mxu0 0.0
  %404 = vmatmul.mubr.f32.gmra.mrb[0].mxu0 %v120
  %v405 = vpop.f32.mrb[0].mxu0
  %v406 = vadd.f32 0.0, %v405
  %v407 = vpop.f32.mrb[0].mxu0
  %408 = vmatprep.mubr.f32.mxu0 0.0
  %409 = vmatmul.mubr.f32.gmra.mrb[0].mxu0 %v123
  %v410 = vpop.f32.mrb[0].mxu0
  %v411 = vadd.f32 0.0, %v410
  %v412 = vpop.f32.mrb[0].mxu0
  %413 = vmatprep.mubr.f32.mxu0 0.0
  %414 = vmatmul.mubr.f32.gmra.mrb[0].mxu0 %v126
  %v415 = vpop.f32.mrb[0].mxu0
  %v416 = vadd.f32 0.0, %v415
  %v417 = vpop.f32.mrb[0].mxu0
  %418 = vmatprep.mubr.f32.mxu0 0.0
  %419 = vmatmul.mubr.f32.gmra.mrb[0].mxu0 %v129
  %v420 = vpop.f32.mrb[0].mxu0
  %v421 = vadd.f32 0.0, %v420
  %v422 = vpop.f32.mrb[0].mxu0
  %423 = vmatprep.mubr.f32.mxu0 0.0
  %424 = vmatmul.mubr.f32.gmra.mrb[0].mxu0 %v132
  %v425 = vpop.f32.mrb[0].mxu0
  %v426 = vadd.f32 0.0, %v425
  %v427 = vpop.f32.mrb[0].mxu0
  %428 = vmatprep.mubr.f32.mxu0 0.0
  %429 = vmatmul.mubr.f32.gmra.mrb[0].mxu0 %v135
  %v430 = vpop.f32.mrb[0].mxu0
  %v431 = vadd.f32 0.0, %v430
  %v432 = vpop.f32.mrb[0].mxu0
  %433 = vmatprep.mubr.f32.mxu0 0.0
  %434 = vmatmul.mubr.f32.gmra.mrb[0].mxu0 %v138
  %v435 = vpop.f32.mrb[0].mxu0
  %v436 = vadd.f32 0.0, %v435
  %v437 = vpop.f32.mrb[0].mxu0
  %438 = vmatprep.mubr.f32.mxu0 0.0
  %439 = vmatmul.mubr.f32.gmra.mrb[0].mxu0 %v141
  %v440 = vpop.f32.mrb[0].mxu0
  %v441 = vadd.f32 0.0, %v440
  %v442 = vpop.f32.mrb[0].mxu0
  %443 = vmatprep.mubr.f32.mxu0 0.0
  %444 = vmatmul.mubr.f32.gmra.mrb[0].mxu0 %v144
  %v445 = vpop.f32.mrb[0].mxu0
  %v446 = vadd.f32 0.0, %v445
  %v447 = vpop.f32.mrb[0].mxu0
  %448 = vmatprep.mubr.f32.mxu0 0.0
  %449 = vmatmul.mubr.f32.gmra.mrb[0].mxu0 %v147
  %v450 = vpop.f32.mrb[0].mxu0
  %v451 = vadd.f32 0.0, %v450
  %v452 = vpop.f32.mrb[0].mxu0
  %453 = vmatprep.mubr.f32.mxu0 0.0
  %454 = vmatmul.mubr.f32.gmra.mrb[0].mxu0 %v150
  %v455 = vpop.f32.mrb[0].mxu0
  %v456 = vadd.f32 0.0, %v455
  %v457 = vpop.f32.mrb[0].mxu0
  %458 = vmatprep.mubr.f32.mxu0 0.0
  %459 = vmatmul.mubr.f32.gmra.mrb[0].mxu0 %v153
  %v460 = vpop.f32.mrb[0].mxu0
  %v461 = vadd.f32 0.0, %v460
  %v462 = vpop.f32.mrb[0].mxu0
  %463 = vmatprep.mubr.f32.mxu0 0.0
  %464 = vmatmul.mubr.f32.gmra.mrb[0].mxu0 %v156
  %v465 = vpop.f32.mrb[0].mxu0
  %v466 = vadd.f32 0.0, %v465
  %v467 = vpop.f32.mrb[0].mxu0
  %468 = vmatprep.mubr.f32.mxu0 0.0
  %469 = vmatmul.mubr.f32.gmra.mrb[0].mxu0 %v159
  %v470 = vpop.f32.mrb[0].mxu0
  %v471 = vadd.f32 0.0, %v470
  %v472 = vpop.f32.mrb[0].mxu0
  %473 = vmatprep.mubr.f32.mxu0 0.0
  %474 = vmatmul.mubr.f32.gmra.mrb[0].mxu0 %v162
  %v475 = vpop.f32.mrb[0].mxu0
  %v476 = vadd.f32 0.0, %v475
  %v477 = vpop.f32.mrb[0].mxu0
  %478 = vmatprep.mubr.f32.mxu0 0.0
  %479 = vmatmul.mubr.f32.gmra.mrb[0].mxu0 %v165
  %v480 = vpop.f32.mrb[0].mxu0
  %v481 = vadd.f32 0.0, %v480
  %v482 = vpop.f32.mrb[0].mxu0
  %483 = vmatprep.mubr.f32.mxu0 0.0
  %484 = vmatmul.mubr.f32.gmra.mrb[0].mxu0 %v168
  %v485 = vpop.f32.mrb[0].mxu0
  %v486 = vadd.f32 0.0, %v485
  %v487 = vpop.f32.mrb[0].mxu0
  %488 = vmatprep.mubr.f32.mxu0 0.0
  %489 = vmatmul.mubr.f32.gmra.mrb[0].mxu0 %v171
  %v490 = vpop.f32.mrb[0].mxu0
  %v491 = vadd.f32 0.0, %v490
  %v492 = vpop.f32.mrb[0].mxu0
  %493 = vmatprep.mubr.f32.mxu0 0.0
  %494 = vmatmul.mubr.f32.gmra.mrb[0].mxu0 %v174
  %v495 = vpop.f32.mrb[0].mxu0
  %v496 = vadd.f32 0.0, %v495
  %v497 = vpop.f32.mrb[0].mxu0
  %498 = vmatprep.mubr.f32.mxu0 0.0
  %499 = vmatmul.mubr.f32.gmra.mrb[0].mxu0 %v177
  %v500 = vpop.f32.mrb[0].mxu0
  %v501 = vadd.f32 0.0, %v500
  %v502 = vpop.f32.mrb[0].mxu0
  %503 = vmatprep.mubr.f32.mxu0 0.0
  %504 = vmatmul.mubr.f32.gmra.mrb[0].mxu0 %v180
  %v505 = vpop.f32.mrb[0].mxu0
  %v506 = vadd.f32 0.0, %v505
  %v507 = vpop.f32.mrb[0].mxu0
  %508 = vmatprep.mubr.f32.mxu0 0.0
  %509 = vmatmul.mubr.f32.gmra.mrb[0].mxu0 %v183
  %v510 = vpop.f32.mrb[0].mxu0
  %v511 = vadd.f32 0.0, %v510
  %v512 = vpop.f32.mrb[0].mxu0
  %513 = vmatprep.mubr.f32.mxu0 0.0
  %514 = vmatmul.mubr.f32.gmra.mrb[0].mxu0 %v186
  %v515 = vpop.f32.mrb[0].mxu0
  %v516 = vadd.f32 0.0, %v515
  %v517 = vpop.f32.mrb[0].mxu0
  %518 = vmatprep.mubr.f32.mxu0 0.0
  %519 = vmatmul.mubr.f32.gmra.mrb[0].mxu0 %v189
  %v520 = vpop.f32.mrb[0].mxu0
  %v521 = vadd.f32 0.0, %v520
  %v522 = vpop.f32.mrb[0].mxu0
  %523 = vmatprep.mubr.f32.mxu0 0.0
  %524 = vmatmul.mubr.f32.gmra.mrb[0].mxu0 %v192
  %v525 = vpop.f32.mrb[0].mxu0
  %v526 = vadd.f32 0.0, %v525
  %v527 = vpop.f32.mrb[0].mxu0
  %528 = vmatprep.mubr.f32.mxu0 0.0
  %529 = vmatmul.mubr.f32.gmra.mrb[0].mxu0 %v195
  %v530 = vpop.f32.mrb[0].mxu0
  %v531 = vadd.f32 0.0, %v530
  %v532 = vpop.f32.mrb[0].mxu0
  %533 = vmatprep.mubr.f32.mxu0 0.0
  %534 = vmatmul.mubr.f32.gmra.mrb[0].mxu0 %v198
  %v535 = vpop.f32.mrb[0].mxu0
  %v536 = vadd.f32 0.0, %v535
  %v537 = vpop.f32.mrb[0].mxu0
  %538 = vmatprep.mubr.f32.mxu0 0.0
  %539 = vmatmul.mubr.f32.gmra.mrb[0].mxu0 %v201
  %v540 = vpop.f32.mrb[0].mxu0
  %v541 = vadd.f32 0.0, %v540
  %v542 = vpop.f32.mrb[0].mxu0
  %543 = vmatprep.mubr.f32.mxu0 0.0
  %544 = vmatmul.mubr.f32.gmra.mrb[0].mxu0 %v204
  %v545 = vpop.f32.mrb[0].mxu0
  %v546 = vadd.f32 0.0, %v545
  %v547 = vpop.f32.mrb[0].mxu0
  %548 = vmatprep.mubr.f32.mxu0 0.0
  %549 = vmatmul.mubr.f32.gmra.mrb[0].mxu0 %v207
  %v550 = vpop.f32.mrb[0].mxu0
  %v551 = vadd.f32 0.0, %v550
  %v552 = vpop.f32.mrb[0].mxu0
  %553 = vmatprep.mubr.f32.mxu0 0.0
  %554 = vmatmul.mubr.f32.gmra.mrb[0].mxu0 %v210
  %v555 = vpop.f32.mrb[0].mxu0
  %v556 = vadd.f32 0.0, %v555
  %v557 = vpop.f32.mrb[0].mxu0
  %558 = vmatprep.mubr.f32.mxu0 0.0
  %559 = vmatmul.mubr.f32.gmra.mrb[0].mxu0 %v213
  %v560 = vpop.f32.mrb[0].mxu0
  %v561 = vadd.f32 0.0, %v560
  %v562 = vpop.f32.mrb[0].mxu0
  %563 = vmatprep.mubr.f32.mxu0 0.0
  %564 = vmatmul.mubr.f32.gmra.mrb[0].mxu0 %v216
  %v565 = vpop.f32.mrb[0].mxu0
  %v566 = vadd.f32 0.0, %v565
  %v567 = vpop.f32.mrb[0].mxu0
  %568 = vmatprep.mubr.f32.mxu0 0.0
  %569 = vmatmul.mubr.f32.gmra.mrb[0].mxu0 %v219
  %v570 = vpop.f32.mrb[0].mxu0
  %v571 = vadd.f32 0.0, %v570
  %v572 = vpop.f32.mrb[0].mxu0
  %573 = vmatprep.mubr.f32.mxu0 0.0
  %574 = vmatmul.mubr.f32.gmra.mrb[0].mxu0 %v222
  %v575 = vpop.f32.mrb[0].mxu0
  %v576 = vadd.f32 0.0, %v575
  %v577 = vpop.f32.mrb[0].mxu0
  %578 = vmatprep.mubr.f32.mxu0 0.0
  %579 = vmatmul.mubr.f32.gmra.mrb[0].mxu0 %v225
  %v580 = vpop.f32.mrb[0].mxu0
  %v581 = vadd.f32 0.0, %v580
  %v582 = vpop.f32.mrb[0].mxu0
  %583 = vmatprep.mubr.f32.mxu0 0.0
  %584 = vmatmul.mubr.f32.gmra.mrb[0].mxu0 %v228
  %v585 = vpop.f32.mrb[0].mxu0
  %v586 = vadd.f32 0.0, %v585
  %v587 = vpop.f32.mrb[0].mxu0
  %588 = vmatprep.mubr.f32.mxu0 0.0
  %589 = vmatmul.mubr.f32.gmra.mrb[0].mxu0 %v231
  %v590 = vpop.f32.mrb[0].mxu0
  %v591 = vadd.f32 0.0, %v590
  %v592 = vpop.f32.mrb[0].mxu0
  %593 = vmatprep.mubr.f32.mxu0 0.0
  %594 = vmatmul.mubr.f32.gmra.mrb[0].mxu0 %v234
  %v595 = vpop.f32.mrb[0].mxu0
  %v596 = vadd.f32 0.0, %v595
  %v597 = vpop.f32.mrb[0].mxu0
  %598 = vmatprep.mubr.f32.mxu0 0.0
  %599 = vmatmul.mubr.f32.gmra.mrb[0].mxu0 %v237
  %v600 = vpop.f32.mrb[0].mxu0
  %v601 = vadd.f32 0.0, %v600
  %v602 = vpop.f32.mrb[0].mxu0
  %603 = vmatprep.mubr.f32.mxu0 0.0
  %604 = vmatmul.mubr.f32.gmra.mrb[0].mxu0 %v240
  %v605 = vpop.f32.mrb[0].mxu0
  %v606 = vadd.f32 0.0, %v605
  %v607 = vpop.f32.mrb[0].mxu0
  %608 = vmatprep.mubr.f32.mxu0 0.0
  %609 = vmatmul.mubr.f32.gmra.mrb[0].mxu0 %v243
  %v610 = vpop.f32.mrb[0].mxu0
  %v611 = vadd.f32 0.0, %v610
  %v612 = vpop.f32.mrb[0].mxu0
  %613 = vmatprep.mubr.f32.mxu0 0.0
  %614 = vmatmul.mubr.f32.gmra.mrb[0].mxu0 %v246
  %v615 = vpop.f32.mrb[0].mxu0
  %v616 = vadd.f32 0.0, %v615
  %v617 = vpop.f32.mrb[0].mxu0
  %618 = vmatprep.mubr.f32.mxu0 0.0
  %619 = vmatmul.mubr.f32.gmra.mrb[0].mxu0 %v249
  %v620 = vpop.f32.mrb[0].mxu0
  %v621 = vadd.f32 0.0, %v620
  %v622 = vpop.f32.mrb[0].mxu0
  %623 = vmatprep.mubr.f32.mxu0 0.0
  %624 = vmatmul.mubr.f32.gmra.mrb[0].mxu0 %v252
  %v625 = vpop.f32.mrb[0].mxu0
  %v626 = vadd.f32 0.0, %v625
  %v627 = vpop.f32.mrb[0].mxu0
  %628 = vmatprep.mubr.f32.mxu0 0.0
  %629 = vmatmul.mubr.f32.gmra.mrb[0].mxu0 %v255
  %v630 = vpop.f32.mrb[0].mxu0
  %v631 = vadd.f32 0.0, %v630
  %v632 = vpop.f32.mrb[0].mxu0
  %633 = vmatprep.mubr.f32.mxu0 0.0
  %634 = vmatmul.mubr.f32.gmra.mrb[0].mxu0 %v258
  %v635 = vpop.f32.mrb[0].mxu0
  %v636 = vadd.f32 0.0, %v635
  %v637 = vpop.f32.mrb[0].mxu0
  %638 = vmatprep.mubr.f32.mxu0 0.0
  %639 = vmatmul.mubr.f32.gmra.mrb[0].mxu0 %v261
  %v640 = vpop.f32.mrb[0].mxu0
  %v641 = vadd.f32 0.0, %v640
  %v642 = vpop.f32.mrb[0].mxu0
  %643 = vmatprep.mubr.f32.mxu0 0.0
  %644 = vmatmul.mubr.f32.gmra.mrb[0].mxu0 %v264
  %v645 = vpop.f32.mrb[0].mxu0
  %v646 = vadd.f32 0.0, %v645
  %v647 = vpop.f32.mrb[0].mxu0
  %648 = vmatprep.mubr.f32.mxu0 0.0
  %649 = vmatmul.mubr.f32.gmra.mrb[0].mxu0 %v267
  %v650 = vpop.f32.mrb[0].mxu0
  %v651 = vadd.f32 0.0, %v650
  %v652 = vpop.f32.mrb[0].mxu0
  %653 = vmatprep.mubr.f32.mxu0 0.0
  %654 = vmatmul.mubr.f32.gmra.mrb[0].mxu0 %v270
  %v655 = vpop.f32.mrb[0].mxu0
  %v656 = vadd.f32 0.0, %v655
  %v657 = vpop.f32.mrb[0].mxu0
  %658 = vmatprep.mubr.f32.mxu0 0.0
  %659 = vmatmul.mubr.f32.gmra.mrb[0].mxu0 %v273
  %v660 = vpop.f32.mrb[0].mxu0
  %v661 = vadd.f32 0.0, %v660
  %v662 = vpop.f32.mrb[0].mxu0
  %663 = vdwg.mxu0
  %v664 = vld [vmem:[%s2] sm:$0x1]
  %v666 = vlaneseq
  %v667 = vshrl.u32 %v666, 7
  %v668 = vsub.s32 0, %v667
  %v669 = vrot.slane %v664, %v668
  %v671 = vmul.f32 %v346, %v669
  %v672 = vmul.f32 %v351, %v669
  %v673 = vmul.f32 %v356, %v669
  %v674 = vmul.f32 %v361, %v669
  %v675 = vmul.f32 %v366, %v669
  %v676 = vmul.f32 %v371, %v669
  %v677 = vmul.f32 %v376, %v669
  %v678 = vmul.f32 %v381, %v669
  %v679 = vmul.f32 %v386, %v669
  %v680 = vmul.f32 %v391, %v669
  %v681 = vmul.f32 %v396, %v669
  %v682 = vmul.f32 %v401, %v669
  %v683 = vmul.f32 %v406, %v669
  %v684 = vmul.f32 %v411, %v669
  %v685 = vmul.f32 %v416, %v669
  %v686 = vmul.f32 %v421, %v669
  %v687 = vmul.f32 %v426, %v669
  %v688 = vmul.f32 %v431, %v669
  %v689 = vmul.f32 %v436, %v669
  %v690 = vmul.f32 %v441, %v669
  %v691 = vmul.f32 %v446, %v669
  %v692 = vmul.f32 %v451, %v669
  %v693 = vmul.f32 %v456, %v669
  %v694 = vmul.f32 %v461, %v669
  %v695 = vmul.f32 %v466, %v669
  %v696 = vmul.f32 %v471, %v669
  %v697 = vmul.f32 %v476, %v669
  %v698 = vmul.f32 %v481, %v669
  %v699 = vmul.f32 %v486, %v669
  %v700 = vmul.f32 %v491, %v669
  %v701 = vmul.f32 %v496, %v669
  %v702 = vmul.f32 %v501, %v669
  %v703 = vmul.f32 %v506, %v669
  %v704 = vmul.f32 %v511, %v669
  %v705 = vmul.f32 %v516, %v669
  %v706 = vmul.f32 %v521, %v669
  %v707 = vmul.f32 %v526, %v669
  %v708 = vmul.f32 %v531, %v669
  %v709 = vmul.f32 %v536, %v669
  %v710 = vmul.f32 %v541, %v669
  %v711 = vmul.f32 %v546, %v669
  %v712 = vmul.f32 %v551, %v669
  %v713 = vmul.f32 %v556, %v669
  %v714 = vmul.f32 %v561, %v669
  %v715 = vmul.f32 %v566, %v669
  %v716 = vmul.f32 %v571, %v669
  %v717 = vmul.f32 %v576, %v669
  %v718 = vmul.f32 %v581, %v669
  %v719 = vmul.f32 %v586, %v669
  %v720 = vmul.f32 %v591, %v669
  %v721 = vmul.f32 %v596, %v669
  %v722 = vmul.f32 %v601, %v669
  %v723 = vmul.f32 %v606, %v669
  %v724 = vmul.f32 %v611, %v669
  %v725 = vmul.f32 %v616, %v669
  %v726 = vmul.f32 %v621, %v669
  %v727 = vmul.f32 %v626, %v669
  %v728 = vmul.f32 %v631, %v669
  %v729 = vmul.f32 %v636, %v669
  %v730 = vmul.f32 %v641, %v669
  %v731 = vmul.f32 %v646, %v669
  %v732 = vmul.f32 %v651, %v669
  %v733 = vmul.f32 %v656, %v669
  %v734 = vmul.f32 %v661, %v669
  %v735 = vld [vmem:[%s3] sm:$0x1]
  %v737 = vlaneseq
  %v738 = vshrl.u32 %v737, 7
  %v739 = vsub.s32 0, %v738
  %v740 = vrot.slane %v735, %v739
  %v742 = vadd.f32 %v671, %v740
  %v743 = vadd.f32 %v672, %v740
  %v744 = vadd.f32 %v673, %v740
  %v745 = vadd.f32 %v674, %v740
  %v746 = vadd.f32 %v675, %v740
  %v747 = vadd.f32 %v676, %v740
  %v748 = vadd.f32 %v677, %v740
  %v749 = vadd.f32 %v678, %v740
  %v750 = vadd.f32 %v679, %v740
  %v751 = vadd.f32 %v680, %v740
  %v752 = vadd.f32 %v681, %v740
  %v753 = vadd.f32 %v682, %v740
  %v754 = vadd.f32 %v683, %v740
  %v755 = vadd.f32 %v684, %v740
  %v756 = vadd.f32 %v685, %v740
  %v757 = vadd.f32 %v686, %v740
  %v758 = vadd.f32 %v687, %v740
  %v759 = vadd.f32 %v688, %v740
  %v760 = vadd.f32 %v689, %v740
  %v761 = vadd.f32 %v690, %v740
  %v762 = vadd.f32 %v691, %v740
  %v763 = vadd.f32 %v692, %v740
  %v764 = vadd.f32 %v693, %v740
  %v765 = vadd.f32 %v694, %v740
  %v766 = vadd.f32 %v695, %v740
  %v767 = vadd.f32 %v696, %v740
  %v768 = vadd.f32 %v697, %v740
  %v769 = vadd.f32 %v698, %v740
  %v770 = vadd.f32 %v699, %v740
  %v771 = vadd.f32 %v700, %v740
  %v772 = vadd.f32 %v701, %v740
  %v773 = vadd.f32 %v702, %v740
  %v774 = vadd.f32 %v703, %v740
  %v775 = vadd.f32 %v704, %v740
  %v776 = vadd.f32 %v705, %v740
  %v777 = vadd.f32 %v706, %v740
  %v778 = vadd.f32 %v707, %v740
  %v779 = vadd.f32 %v708, %v740
  %v780 = vadd.f32 %v709, %v740
  %v781 = vadd.f32 %v710, %v740
  %v782 = vadd.f32 %v711, %v740
  %v783 = vadd.f32 %v712, %v740
  %v784 = vadd.f32 %v713, %v740
  %v785 = vadd.f32 %v714, %v740
  %v786 = vadd.f32 %v715, %v740
  %v787 = vadd.f32 %v716, %v740
  %v788 = vadd.f32 %v717, %v740
  %v789 = vadd.f32 %v718, %v740
  %v790 = vadd.f32 %v719, %v740
  %v791 = vadd.f32 %v720, %v740
  %v792 = vadd.f32 %v721, %v740
  %v793 = vadd.f32 %v722, %v740
  %v794 = vadd.f32 %v723, %v740
  %v795 = vadd.f32 %v724, %v740
  %v796 = vadd.f32 %v725, %v740
  %v797 = vadd.f32 %v726, %v740
  %v798 = vadd.f32 %v727, %v740
  %v799 = vadd.f32 %v728, %v740
  %v800 = vadd.f32 %v729, %v740
  %v801 = vadd.f32 %v730, %v740
  %v802 = vadd.f32 %v731, %v740
  %v803 = vadd.f32 %v732, %v740
  %v804 = vadd.f32 %v733, %v740
  %v805 = vadd.f32 %v734, %v740
  %v806 = vxor.u32 %v742, 2147483648
  %v807 = vxor.u32 %v743, 2147483648
  %v808 = vxor.u32 %v744, 2147483648
  %v809 = vxor.u32 %v745, 2147483648
  %v810 = vxor.u32 %v746, 2147483648
  %v811 = vxor.u32 %v747, 2147483648
  %v812 = vxor.u32 %v748, 2147483648
  %v813 = vxor.u32 %v749, 2147483648
  %v814 = vxor.u32 %v750, 2147483648
  %v815 = vxor.u32 %v751, 2147483648
  %v816 = vxor.u32 %v752, 2147483648
  %v817 = vxor.u32 %v753, 2147483648
  %v818 = vxor.u32 %v754, 2147483648
  %v819 = vxor.u32 %v755, 2147483648
  %v820 = vxor.u32 %v756, 2147483648
  %v821 = vxor.u32 %v757, 2147483648
  %v822 = vxor.u32 %v758, 2147483648
  %v823 = vxor.u32 %v759, 2147483648
  %v824 = vxor.u32 %v760, 2147483648
  %v825 = vxor.u32 %v761, 2147483648
  %v826 = vxor.u32 %v762, 2147483648
  %v827 = vxor.u32 %v763, 2147483648
  %v828 = vxor.u32 %v764, 2147483648
  %v829 = vxor.u32 %v765, 2147483648
  %v830 = vxor.u32 %v766, 2147483648
  %v831 = vxor.u32 %v767, 2147483648
  %v832 = vxor.u32 %v768, 2147483648
  %v833 = vxor.u32 %v769, 2147483648
  %v834 = vxor.u32 %v770, 2147483648
  %v835 = vxor.u32 %v771, 2147483648
  %v836 = vxor.u32 %v772, 2147483648
  %v837 = vxor.u32 %v773, 2147483648
  %v838 = vxor.u32 %v774, 2147483648
  %v839 = vxor.u32 %v775, 2147483648
  %v840 = vxor.u32 %v776, 2147483648
  %v841 = vxor.u32 %v777, 2147483648
  %v842 = vxor.u32 %v778, 2147483648
  %v843 = vxor.u32 %v779, 2147483648
  %v844 = vxor.u32 %v780, 2147483648
  %v845 = vxor.u32 %v781, 2147483648
  %v846 = vxor.u32 %v782, 2147483648
  %v847 = vxor.u32 %v783, 2147483648
  %v848 = vxor.u32 %v784, 2147483648
  %v849 = vxor.u32 %v785, 2147483648
  %v850 = vxor.u32 %v786, 2147483648
  %v851 = vxor.u32 %v787, 2147483648
  %v852 = vxor.u32 %v788, 2147483648
  %v853 = vxor.u32 %v789, 2147483648
  %v854 = vxor.u32 %v790, 2147483648
  %v855 = vxor.u32 %v791, 2147483648
  %v856 = vxor.u32 %v792, 2147483648
  %v857 = vxor.u32 %v793, 2147483648
  %v858 = vxor.u32 %v794, 2147483648
  %v859 = vxor.u32 %v795, 2147483648
  %v860 = vxor.u32 %v796, 2147483648
  %v861 = vxor.u32 %v797, 2147483648
  %v862 = vxor.u32 %v798, 2147483648
  %v863 = vxor.u32 %v799, 2147483648
  %v864 = vxor.u32 %v800, 2147483648
  %v865 = vxor.u32 %v801, 2147483648
  %v866 = vxor.u32 %v802, 2147483648
  %v867 = vxor.u32 %v803, 2147483648
  %v868 = vxor.u32 %v804, 2147483648
  %v869 = vxor.u32 %v805, 2147483648
  %v870 = vmul.f32 %v806, 1.442695
  %v871 = vpow.pop %v870
  %v872 = vmul.f32 %v807, 1.442695
  %v873 = vpow.pop %v872
  %v874 = vmul.f32 %v808, 1.442695
  %v875 = vpow.pop %v874
  %v876 = vmul.f32 %v809, 1.442695
  %v877 = vpow.pop %v876
  %v878 = vmul.f32 %v810, 1.442695
  %v879 = vpow.pop %v878
  %v880 = vmul.f32 %v811, 1.442695
  %v881 = vpow.pop %v880
  %v882 = vmul.f32 %v812, 1.442695
  %v883 = vpow.pop %v882
  %v884 = vmul.f32 %v813, 1.442695
  %v885 = vpow.pop %v884
  %v886 = vmul.f32 %v814, 1.442695
  %v887 = vpow.pop %v886
  %v888 = vmul.f32 %v815, 1.442695
  %v889 = vpow.pop %v888
  %v890 = vmul.f32 %v816, 1.442695
  %v891 = vpow.pop %v890
  %v892 = vmul.f32 %v817, 1.442695
  %v893 = vpow.pop %v892
  %v894 = vmul.f32 %v818, 1.442695
  %v895 = vpow.pop %v894
  %v896 = vmul.f32 %v819, 1.442695
  %v897 = vpow.pop %v896
  %v898 = vmul.f32 %v820, 1.442695
  %v899 = vpow.pop %v898
  %v900 = vmul.f32 %v821, 1.442695
  %v901 = vpow.pop %v900
  %v902 = vmul.f32 %v822, 1.442695
  %v903 = vpow.pop %v902
  %v904 = vmul.f32 %v823, 1.442695
  %v905 = vpow.pop %v904
  %v906 = vmul.f32 %v824, 1.442695
  %v907 = vpow.pop %v906
  %v908 = vmul.f32 %v825, 1.442695
  %v909 = vpow.pop %v908
  %v910 = vmul.f32 %v826, 1.442695
  %v911 = vpow.pop %v910
  %v912 = vmul.f32 %v827, 1.442695
  %v913 = vpow.pop %v912
  %v914 = vmul.f32 %v828, 1.442695
  %v915 = vpow.pop %v914
  %v916 = vmul.f32 %v829, 1.442695
  %v917 = vpow.pop %v916
  %v918 = vmul.f32 %v830, 1.442695
  %v919 = vpow.pop %v918
  %v920 = vmul.f32 %v831, 1.442695
  %v921 = vpow.pop %v920
  %v922 = vmul.f32 %v832, 1.442695
  %v923 = vpow.pop %v922
  %v924 = vmul.f32 %v833, 1.442695
  %v925 = vpow.pop %v924
  %v926 = vmul.f32 %v834, 1.442695
  %v927 = vpow.pop %v926
  %v928 = vmul.f32 %v835, 1.442695
  %v929 = vpow.pop %v928
  %v930 = vmul.f32 %v836, 1.442695
  %v931 = vpow.pop %v930
  %v932 = vmul.f32 %v837, 1.442695
  %v933 = vpow.pop %v932
  %v934 = vmul.f32 %v838, 1.442695
  %v935 = vpow.pop %v934
  %v936 = vmul.f32 %v839, 1.442695
  %v937 = vpow.pop %v936
  %v938 = vmul.f32 %v840, 1.442695
  %v939 = vpow.pop %v938
  %v940 = vmul.f32 %v841, 1.442695
  %v941 = vpow.pop %v940
  %v942 = vmul.f32 %v842, 1.442695
  %v943 = vpow.pop %v942
  %v944 = vmul.f32 %v843, 1.442695
  %v945 = vpow.pop %v944
  %v946 = vmul.f32 %v844, 1.442695
  %v947 = vpow.pop %v946
  %v948 = vmul.f32 %v845, 1.442695
  %v949 = vpow.pop %v948
  %v950 = vmul.f32 %v846, 1.442695
  %v951 = vpow.pop %v950
  %v952 = vmul.f32 %v847, 1.442695
  %v953 = vpow.pop %v952
  %v954 = vmul.f32 %v848, 1.442695
  %v955 = vpow.pop %v954
  %v956 = vmul.f32 %v849, 1.442695
  %v957 = vpow.pop %v956
  %v958 = vmul.f32 %v850, 1.442695
  %v959 = vpow.pop %v958
  %v960 = vmul.f32 %v851, 1.442695
  %v961 = vpow.pop %v960
  %v962 = vmul.f32 %v852, 1.442695
  %v963 = vpow.pop %v962
  %v964 = vmul.f32 %v853, 1.442695
  %v965 = vpow.pop %v964
  %v966 = vmul.f32 %v854, 1.442695
  %v967 = vpow.pop %v966
  %v968 = vmul.f32 %v855, 1.442695
  %v969 = vpow.pop %v968
  %v970 = vmul.f32 %v856, 1.442695
  %v971 = vpow.pop %v970
  %v972 = vmul.f32 %v857, 1.442695
  %v973 = vpow.pop %v972
  %v974 = vmul.f32 %v858, 1.442695
  %v975 = vpow.pop %v974
  %v976 = vmul.f32 %v859, 1.442695
  %v977 = vpow.pop %v976
  %v978 = vmul.f32 %v860, 1.442695
  %v979 = vpow.pop %v978
  %v980 = vmul.f32 %v861, 1.442695
  %v981 = vpow.pop %v980
  %v982 = vmul.f32 %v862, 1.442695
  %v983 = vpow.pop %v982
  %v984 = vmul.f32 %v863, 1.442695
  %v985 = vpow.pop %v984
  %v986 = vmul.f32 %v864, 1.442695
  %v987 = vpow.pop %v986
  %v988 = vmul.f32 %v865, 1.442695
  %v989 = vpow.pop %v988
  %v990 = vmul.f32 %v866, 1.442695
  %v991 = vpow.pop %v990
  %v992 = vmul.f32 %v867, 1.442695
  %v993 = vpow.pop %v992
  %v994 = vmul.f32 %v868, 1.442695
  %v995 = vpow.pop %v994
  %v996 = vmul.f32 %v869, 1.442695
  %v997 = vpow.pop %v996
  %v998 = vadd.f32 %v871, 1.0
  %v999 = vadd.f32 %v873, 1.0
  %v1000 = vadd.f32 %v875, 1.0
  %v1001 = vadd.f32 %v877, 1.0
  %v1002 = vadd.f32 %v879, 1.0
  %v1003 = vadd.f32 %v881, 1.0
  %v1004 = vadd.f32 %v883, 1.0
  %v1005 = vadd.f32 %v885, 1.0
  %v1006 = vadd.f32 %v887, 1.0
  %v1007 = vadd.f32 %v889, 1.0
  %v1008 = vadd.f32 %v891, 1.0
  %v1009 = vadd.f32 %v893, 1.0
  %v1010 = vadd.f32 %v895, 1.0
  %v1011 = vadd.f32 %v897, 1.0
  %v1012 = vadd.f32 %v899, 1.0
  %v1013 = vadd.f32 %v901, 1.0
  %v1014 = vadd.f32 %v903, 1.0
  %v1015 = vadd.f32 %v905, 1.0
  %v1016 = vadd.f32 %v907, 1.0
  %v1017 = vadd.f32 %v909, 1.0
  %v1018 = vadd.f32 %v911, 1.0
  %v1019 = vadd.f32 %v913, 1.0
  %v1020 = vadd.f32 %v915, 1.0
  %v1021 = vadd.f32 %v917, 1.0
  %v1022 = vadd.f32 %v919, 1.0
  %v1023 = vadd.f32 %v921, 1.0
  %v1024 = vadd.f32 %v923, 1.0
  %v1025 = vadd.f32 %v925, 1.0
  %v1026 = vadd.f32 %v927, 1.0
  %v1027 = vadd.f32 %v929, 1.0
  %v1028 = vadd.f32 %v931, 1.0
  %v1029 = vadd.f32 %v933, 1.0
  %v1030 = vadd.f32 %v935, 1.0
  %v1031 = vadd.f32 %v937, 1.0
  %v1032 = vadd.f32 %v939, 1.0
  %v1033 = vadd.f32 %v941, 1.0
  %v1034 = vadd.f32 %v943, 1.0
  %v1035 = vadd.f32 %v945, 1.0
  %v1036 = vadd.f32 %v947, 1.0
  %v1037 = vadd.f32 %v949, 1.0
  %v1038 = vadd.f32 %v951, 1.0
  %v1039 = vadd.f32 %v953, 1.0
  %v1040 = vadd.f32 %v955, 1.0
  %v1041 = vadd.f32 %v957, 1.0
  %v1042 = vadd.f32 %v959, 1.0
  %v1043 = vadd.f32 %v961, 1.0
  %v1044 = vadd.f32 %v963, 1.0
  %v1045 = vadd.f32 %v965, 1.0
  %v1046 = vadd.f32 %v967, 1.0
  %v1047 = vadd.f32 %v969, 1.0
  %v1048 = vadd.f32 %v971, 1.0
  %v1049 = vadd.f32 %v973, 1.0
  %v1050 = vadd.f32 %v975, 1.0
  %v1051 = vadd.f32 %v977, 1.0
  %v1052 = vadd.f32 %v979, 1.0
  %v1053 = vadd.f32 %v981, 1.0
  %v1054 = vadd.f32 %v983, 1.0
  %v1055 = vadd.f32 %v985, 1.0
  %v1056 = vadd.f32 %v987, 1.0
  %v1057 = vadd.f32 %v989, 1.0
  %v1058 = vadd.f32 %v991, 1.0
  %v1059 = vadd.f32 %v993, 1.0
  %v1060 = vadd.f32 %v995, 1.0
  %v1061 = vadd.f32 %v997, 1.0
  %v1062 = vrcp.pop %v998
  %v1063 = vmul.f32 1.0, %v1062
  %v1064 = vrcp.pop %v999
  %v1065 = vmul.f32 1.0, %v1064
  %v1066 = vrcp.pop %v1000
  %v1067 = vmul.f32 1.0, %v1066
  %v1068 = vrcp.pop %v1001
  %v1069 = vmul.f32 1.0, %v1068
  %v1070 = vrcp.pop %v1002
  %v1071 = vmul.f32 1.0, %v1070
  %v1072 = vrcp.pop %v1003
  %v1073 = vmul.f32 1.0, %v1072
  %v1074 = vrcp.pop %v1004
  %v1075 = vmul.f32 1.0, %v1074
  %v1076 = vrcp.pop %v1005
  %v1077 = vmul.f32 1.0, %v1076
  %v1078 = vrcp.pop %v1006
  %v1079 = vmul.f32 1.0, %v1078
  %v1080 = vrcp.pop %v1007
  %v1081 = vmul.f32 1.0, %v1080
  %v1082 = vrcp.pop %v1008
  %v1083 = vmul.f32 1.0, %v1082
  %v1084 = vrcp.pop %v1009
  %v1085 = vmul.f32 1.0, %v1084
  %v1086 = vrcp.pop %v1010
  %v1087 = vmul.f32 1.0, %v1086
  %v1088 = vrcp.pop %v1011
  %v1089 = vmul.f32 1.0, %v1088
  %v1090 = vrcp.pop %v1012
  %v1091 = vmul.f32 1.0, %v1090
  %v1092 = vrcp.pop %v1013
  %v1093 = vmul.f32 1.0, %v1092
  %v1094 = vrcp.pop %v1014
  %v1095 = vmul.f32 1.0, %v1094
  %v1096 = vrcp.pop %v1015
  %v1097 = vmul.f32 1.0, %v1096
  %v1098 = vrcp.pop %v1016
  %v1099 = vmul.f32 1.0, %v1098
  %v1100 = vrcp.pop %v1017
  %v1101 = vmul.f32 1.0, %v1100
  %v1102 = vrcp.pop %v1018
  %v1103 = vmul.f32 1.0, %v1102
  %v1104 = vrcp.pop %v1019
  %v1105 = vmul.f32 1.0, %v1104
  %v1106 = vrcp.pop %v1020
  %v1107 = vmul.f32 1.0, %v1106
  %v1108 = vrcp.pop %v1021
  %v1109 = vmul.f32 1.0, %v1108
  %v1110 = vrcp.pop %v1022
  %v1111 = vmul.f32 1.0, %v1110
  %v1112 = vrcp.pop %v1023
  %v1113 = vmul.f32 1.0, %v1112
  %v1114 = vrcp.pop %v1024
  %v1115 = vmul.f32 1.0, %v1114
  %v1116 = vrcp.pop %v1025
  %v1117 = vmul.f32 1.0, %v1116
  %v1118 = vrcp.pop %v1026
  %v1119 = vmul.f32 1.0, %v1118
  %v1120 = vrcp.pop %v1027
  %v1121 = vmul.f32 1.0, %v1120
  %v1122 = vrcp.pop %v1028
  %v1123 = vmul.f32 1.0, %v1122
  %v1124 = vrcp.pop %v1029
  %v1125 = vmul.f32 1.0, %v1124
  %v1126 = vrcp.pop %v1030
  %v1127 = vmul.f32 1.0, %v1126
  %v1128 = vrcp.pop %v1031
  %v1129 = vmul.f32 1.0, %v1128
  %v1130 = vrcp.pop %v1032
  %v1131 = vmul.f32 1.0, %v1130
  %v1132 = vrcp.pop %v1033
  %v1133 = vmul.f32 1.0, %v1132
  %v1134 = vrcp.pop %v1034
  %v1135 = vmul.f32 1.0, %v1134
  %v1136 = vrcp.pop %v1035
  %v1137 = vmul.f32 1.0, %v1136
  %v1138 = vrcp.pop %v1036
  %v1139 = vmul.f32 1.0, %v1138
  %v1140 = vrcp.pop %v1037
  %v1141 = vmul.f32 1.0, %v1140
  %v1142 = vrcp.pop %v1038
  %v1143 = vmul.f32 1.0, %v1142
  %v1144 = vrcp.pop %v1039
  %v1145 = vmul.f32 1.0, %v1144
  %v1146 = vrcp.pop %v1040
  %v1147 = vmul.f32 1.0, %v1146
  %v1148 = vrcp.pop %v1041
  %v1149 = vmul.f32 1.0, %v1148
  %v1150 = vrcp.pop %v1042
  %v1151 = vmul.f32 1.0, %v1150
  %v1152 = vrcp.pop %v1043
  %v1153 = vmul.f32 1.0, %v1152
  %v1154 = vrcp.pop %v1044
  %v1155 = vmul.f32 1.0, %v1154
  %v1156 = vrcp.pop %v1045
  %v1157 = vmul.f32 1.0, %v1156
  %v1158 = vrcp.pop %v1046
  %v1159 = vmul.f32 1.0, %v1158
  %v1160 = vrcp.pop %v1047
  %v1161 = vmul.f32 1.0, %v1160
  %v1162 = vrcp.pop %v1048
  %v1163 = vmul.f32 1.0, %v1162
  %v1164 = vrcp.pop %v1049
  %v1165 = vmul.f32 1.0, %v1164
  %v1166 = vrcp.pop %v1050
  %v1167 = vmul.f32 1.0, %v1166
  %v1168 = vrcp.pop %v1051
  %v1169 = vmul.f32 1.0, %v1168
  %v1170 = vrcp.pop %v1052
  %v1171 = vmul.f32 1.0, %v1170
  %v1172 = vrcp.pop %v1053
  %v1173 = vmul.f32 1.0, %v1172
  %v1174 = vrcp.pop %v1054
  %v1175 = vmul.f32 1.0, %v1174
  %v1176 = vrcp.pop %v1055
  %v1177 = vmul.f32 1.0, %v1176
  %v1178 = vrcp.pop %v1056
  %v1179 = vmul.f32 1.0, %v1178
  %v1180 = vrcp.pop %v1057
  %v1181 = vmul.f32 1.0, %v1180
  %v1182 = vrcp.pop %v1058
  %v1183 = vmul.f32 1.0, %v1182
  %v1184 = vrcp.pop %v1059
  %v1185 = vmul.f32 1.0, %v1184
  %v1186 = vrcp.pop %v1060
  %v1187 = vmul.f32 1.0, %v1186
  %v1188 = vrcp.pop %v1061
  %v1189 = vmul.f32 1.0, %v1188
  %v1190 = vmul.f32 %v742, %v1063
  %v1191 = vmul.f32 %v743, %v1065
  %v1192 = vmul.f32 %v744, %v1067
  %v1193 = vmul.f32 %v745, %v1069
  %v1194 = vmul.f32 %v746, %v1071
  %v1195 = vmul.f32 %v747, %v1073
  %v1196 = vmul.f32 %v748, %v1075
  %v1197 = vmul.f32 %v749, %v1077
  %v1198 = vmul.f32 %v750, %v1079
  %v1199 = vmul.f32 %v751, %v1081
  %v1200 = vmul.f32 %v752, %v1083
  %v1201 = vmul.f32 %v753, %v1085
  %v1202 = vmul.f32 %v754, %v1087
  %v1203 = vmul.f32 %v755, %v1089
  %v1204 = vmul.f32 %v756, %v1091
  %v1205 = vmul.f32 %v757, %v1093
  %v1206 = vmul.f32 %v758, %v1095
  %v1207 = vmul.f32 %v759, %v1097
  %v1208 = vmul.f32 %v760, %v1099
  %v1209 = vmul.f32 %v761, %v1101
  %v1210 = vmul.f32 %v762, %v1103
  %v1211 = vmul.f32 %v763, %v1105
  %v1212 = vmul.f32 %v764, %v1107
  %v1213 = vmul.f32 %v765, %v1109
  %v1214 = vmul.f32 %v766, %v1111
  %v1215 = vmul.f32 %v767, %v1113
  %v1216 = vmul.f32 %v768, %v1115
  %v1217 = vmul.f32 %v769, %v1117
  %v1218 = vmul.f32 %v770, %v1119
  %v1219 = vmul.f32 %v771, %v1121
  %v1220 = vmul.f32 %v772, %v1123
  %v1221 = vmul.f32 %v773, %v1125
  %v1222 = vmul.f32 %v774, %v1127
  %v1223 = vmul.f32 %v775, %v1129
  %v1224 = vmul.f32 %v776, %v1131
  %v1225 = vmul.f32 %v777, %v1133
  %v1226 = vmul.f32 %v778, %v1135
  %v1227 = vmul.f32 %v779, %v1137
  %v1228 = vmul.f32 %v780, %v1139
  %v1229 = vmul.f32 %v781, %v1141
  %v1230 = vmul.f32 %v782, %v1143
  %v1231 = vmul.f32 %v783, %v1145
  %v1232 = vmul.f32 %v784, %v1147
  %v1233 = vmul.f32 %v785, %v1149
  %v1234 = vmul.f32 %v786, %v1151
  %v1235 = vmul.f32 %v787, %v1153
  %v1236 = vmul.f32 %v788, %v1155
  %v1237 = vmul.f32 %v789, %v1157
  %v1238 = vmul.f32 %v790, %v1159
  %v1239 = vmul.f32 %v791, %v1161
  %v1240 = vmul.f32 %v792, %v1163
  %v1241 = vmul.f32 %v793, %v1165
  %v1242 = vmul.f32 %v794, %v1167
  %v1243 = vmul.f32 %v795, %v1169
  %v1244 = vmul.f32 %v796, %v1171
  %v1245 = vmul.f32 %v797, %v1173
  %v1246 = vmul.f32 %v798, %v1175
  %v1247 = vmul.f32 %v799, %v1177
  %v1248 = vmul.f32 %v800, %v1179
  %v1249 = vmul.f32 %v801, %v1181
  %v1250 = vmul.f32 %v802, %v1183
  %v1251 = vmul.f32 %v803, %v1185
  %v1252 = vmul.f32 %v804, %v1187
  %v1253 = vmul.f32 %v805, %v1189
  %vm1254 = vcmask 15360
  %1255 = vst.msk [vmem:[%s4] sm:$0xff] %vm1254, %v1190
  %1256 = vst.msk [vmem:[%s4 + $0x8] sm:$0xff] %vm1254, %v1191
  %1257 = vst.msk [vmem:[%s4 + $0x10] sm:$0xff] %vm1254, %v1192
  %1258 = vst.msk [vmem:[%s4 + $0x18] sm:$0xff] %vm1254, %v1193
  %1259 = vst.msk [vmem:[%s4 + $0x20] sm:$0xff] %vm1254, %v1194
  %1260 = vst.msk [vmem:[%s4 + $0x28] sm:$0xff] %vm1254, %v1195
  %1261 = vst.msk [vmem:[%s4 + $0x30] sm:$0xff] %vm1254, %v1196
  %1262 = vst.msk [vmem:[%s4 + $0x38] sm:$0xff] %vm1254, %v1197
  %1263 = vst.msk [vmem:[%s4 + $0x40] sm:$0xff] %vm1254, %v1198
  %1264 = vst.msk [vmem:[%s4 + $0x48] sm:$0xff] %vm1254, %v1199
  %1265 = vst.msk [vmem:[%s4 + $0x50] sm:$0xff] %vm1254, %v1200
  %1266 = vst.msk [vmem:[%s4 + $0x58] sm:$0xff] %vm1254, %v1201
  %1267 = vst.msk [vmem:[%s4 + $0x60] sm:$0xff] %vm1254, %v1202
  %1268 = vst.msk [vmem:[%s4 + $0x68] sm:$0xff] %vm1254, %v1203
  %1269 = vst.msk [vmem:[%s4 + $0x70] sm:$0xff] %vm1254, %v1204
  %1270 = vst.msk [vmem:[%s4 + $0x78] sm:$0xff] %vm1254, %v1205
  %1271 = vst.msk [vmem:[%s4 + $0x80] sm:$0xff] %vm1254, %v1206
  %1272 = vst.msk [vmem:[%s4 + $0x88] sm:$0xff] %vm1254, %v1207
  %1273 = vst.msk [vmem:[%s4 + $0x90] sm:$0xff] %vm1254, %v1208
  %1274 = vst.msk [vmem:[%s4 + $0x98] sm:$0xff] %vm1254, %v1209
  %1275 = vst.msk [vmem:[%s4 + $0xa0] sm:$0xff] %vm1254, %v1210
  %1276 = vst.msk [vmem:[%s4 + $0xa8] sm:$0xff] %vm1254, %v1211
  %1277 = vst.msk [vmem:[%s4 + $0xb0] sm:$0xff] %vm1254, %v1212
  %1278 = vst.msk [vmem:[%s4 + $0xb8] sm:$0xff] %vm1254, %v1213
  %1279 = vst.msk [vmem:[%s4 + $0xc0] sm:$0xff] %vm1254, %v1214
  %1280 = vst.msk [vmem:[%s4 + $0xc8] sm:$0xff] %vm1254, %v1215
  %1281 = vst.msk [vmem:[%s4 + $0xd0] sm:$0xff] %vm1254, %v1216
  %1282 = vst.msk [vmem:[%s4 + $0xd8] sm:$0xff] %vm1254, %v1217
  %1283 = vst.msk [vmem:[%s4 + $0xe0] sm:$0xff] %vm1254, %v1218
  %1284 = vst.msk [vmem:[%s4 + $0xe8] sm:$0xff] %vm1254, %v1219
  %1285 = vst.msk [vmem:[%s4 + $0xf0] sm:$0xff] %vm1254, %v1220
  %1286 = vst.msk [vmem:[%s4 + $0xf8] sm:$0xff] %vm1254, %v1221
  %1287 = vst.msk [vmem:[%s4 + $0x100] sm:$0xff] %vm1254, %v1222
  %1288 = vst.msk [vmem:[%s4 + $0x108] sm:$0xff] %vm1254, %v1223
  %1289 = vst.msk [vmem:[%s4 + $0x110] sm:$0xff] %vm1254, %v1224
  %1290 = vst.msk [vmem:[%s4 + $0x118] sm:$0xff] %vm1254, %v1225
  %1291 = vst.msk [vmem:[%s4 + $0x120] sm:$0xff] %vm1254, %v1226
  %1292 = vst.msk [vmem:[%s4 + $0x128] sm:$0xff] %vm1254, %v1227
  %1293 = vst.msk [vmem:[%s4 + $0x130] sm:$0xff] %vm1254, %v1228
  %1294 = vst.msk [vmem:[%s4 + $0x138] sm:$0xff] %vm1254, %v1229
  %1295 = vst.msk [vmem:[%s4 + $0x140] sm:$0xff] %vm1254, %v1230
  %1296 = vst.msk [vmem:[%s4 + $0x148] sm:$0xff] %vm1254, %v1231
  %1297 = vst.msk [vmem:[%s4 + $0x150] sm:$0xff] %vm1254, %v1232
  %1298 = vst.msk [vmem:[%s4 + $0x158] sm:$0xff] %vm1254, %v1233
  %1299 = vst.msk [vmem:[%s4 + $0x160] sm:$0xff] %vm1254, %v1234
  %1300 = vst.msk [vmem:[%s4 + $0x168] sm:$0xff] %vm1254, %v1235
  %1301 = vst.msk [vmem:[%s4 + $0x170] sm:$0xff] %vm1254, %v1236
  %1302 = vst.msk [vmem:[%s4 + $0x178] sm:$0xff] %vm1254, %v1237
  %1303 = vst.msk [vmem:[%s4 + $0x180] sm:$0xff] %vm1254, %v1238
  %1304 = vst.msk [vmem:[%s4 + $0x188] sm:$0xff] %vm1254, %v1239
  %1305 = vst.msk [vmem:[%s4 + $0x190] sm:$0xff] %vm1254, %v1240
  %1306 = vst.msk [vmem:[%s4 + $0x198] sm:$0xff] %vm1254, %v1241
  %1307 = vst.msk [vmem:[%s4 + $0x1a0] sm:$0xff] %vm1254, %v1242
  %1308 = vst.msk [vmem:[%s4 + $0x1a8] sm:$0xff] %vm1254, %v1243
  %1309 = vst.msk [vmem:[%s4 + $0x1b0] sm:$0xff] %vm1254, %v1244
  %1310 = vst.msk [vmem:[%s4 + $0x1b8] sm:$0xff] %vm1254, %v1245
  %1311 = vst.msk [vmem:[%s4 + $0x1c0] sm:$0xff] %vm1254, %v1246
  %1312 = vst.msk [vmem:[%s4 + $0x1c8] sm:$0xff] %vm1254, %v1247
  %1313 = vst.msk [vmem:[%s4 + $0x1d0] sm:$0xff] %vm1254, %v1248
  %1314 = vst.msk [vmem:[%s4 + $0x1d8] sm:$0xff] %vm1254, %v1249
  %1315 = vst.msk [vmem:[%s4 + $0x1e0] sm:$0xff] %vm1254, %v1250
  %1316 = vst.msk [vmem:[%s4 + $0x1e8] sm:$0xff] %vm1254, %v1251
  %1317 = vst.msk [vmem:[%s4 + $0x1f0] sm:$0xff] %vm1254, %v1252
  %1318 = vst.msk [vmem:[%s4 + $0x1f8] sm:$0xff] %vm1254, %v1253
  // Predicated region
  $region18: #{tpu_custom_call.1} parent=0 // pred_check
    _
  $region19: #{tpu_custom_call.1} parent=0 // pred_check_branch
    %1320 = sbr.rel (0) target = $region21
  $region20: #{tpu_custom_call.1} parent=0 // pred_region
    _
  $region21: #{tpu_custom_call.1} parent=0 // pred_fallthru
    _
  // Predicated region
  $region22: #{tpu_custom_call.1} parent=0 // pred_check
    _
  $region23: #{tpu_custom_call.1} parent=0 // pred_check_branch
    %1322 = sbr.rel (0) target = $region25
  $region24: #{tpu_custom_call.1} parent=0 // pred_region
    _
  $region25: #{tpu_custom_call.1} parent=0 // pred_fallthru
    _

</llo_original>
